<compile_context>
chip_gen: v7x
topology: tpu7x:2x2x1
jax: 0.10.0
libtpu: 0.0.40
codegen_flags: <defaults>
</compile_context>

<pallas_src>
import functools

import jax
import jax.numpy as jnp
from jax.experimental import pallas as pl
from jax.experimental.pallas import tpu as pltpu

LANE = 128


def _wbce_kernel(out_ref, tgt_ref, loss_ref, acc_ref, *,
                 epsilon, w0, w1, n_elem, tr):
    """Per-tile: clamp, weighted BCE terms, masked VPU accumulate; reduce once."""
    i = pl.program_id(0)

    @pl.when(i == 0)
    def _():
        acc_ref[...] = jnp.zeros_like(acc_ref)

    o = jnp.clip(out_ref[...].astype(jnp.float32), epsilon, 1.0 - epsilon)
    t = tgt_ref[...].astype(jnp.float32)

    loss = w1 * (t * jnp.log(o)) + w0 * ((1.0 - t) * jnp.log(1.0 - o))

    # In-kernel tail mask: global flat index vs. true element count.
    # (int32 flat index; fine for n_elem < 2**31.)
    row = jax.lax.broadcasted_iota(jnp.int32, (tr, LANE), 0)
    col = jax.lax.broadcasted_iota(jnp.int32, (tr, LANE), 1)
    flat_idx = (i * tr + row) * LANE + col
    m = (flat_idx < n_elem).astype(jnp.float32)

    # Vector-shaped accumulator: pure VPU adds, no per-tile XLU reduction.
    acc_ref[...] += loss * m

    @pl.when(i == pl.num_programs(0) - 1)
    def _():
        total = jnp.sum(acc_ref[...], axis=0, keepdims=True)   # (1, LANE)
        total = jnp.sum(total, axis=1, keepdims=True)          # (1, 1)
        loss_ref[...] = -(total / jnp.float32(n_elem))


def weighted_bce_loss(out, target, weights=None, epsilon=0.01):
    assert out.shape == target.shape
    n_elem = out.size

    if weights is None:
        w0, w1 = 1.0, 1.0
    else:
        assert len(weights) == 2
        w0, w1 = float(weights[0]), float(weights[1])

    # Keep floating inputs in their native dtype (bf16 stays bf16 -> half the
    # HBM bytes); non-floating targets are cast to f32 once here.
    o_dtype = out.dtype if jnp.issubdtype(out.dtype, jnp.floating) else jnp.float32
    t_dtype = target.dtype if jnp.issubdtype(target.dtype, jnp.floating) else jnp.float32
    flat_o = jnp.ravel(out).astype(o_dtype)
    flat_t = jnp.ravel(target).astype(t_dtype)

    rows = pl.cdiv(n_elem, LANE)
    # Row tile: multiple of 16 (valid sublane tiling for both f32 and bf16),
    # capped at 1024 (measured mem-bound sweet spot; ~0.5-1 MiB per buffer
    # keeps the double-buffered footprint well inside every VMEM budget).
    tr = min(((rows + 15) // 16) * 16, 1024)
    rows_p = pl.cdiv(rows, tr) * tr
    pad = rows_p * LANE - n_elem

    # Single pad per stream; value 0 is safe (clipped before log, masked out).
    if pad:
        flat_o = jnp.pad(flat_o, (0, pad))
        flat_t = jnp.pad(flat_t, (0, pad))

    o2 = flat_o.reshape(rows_p, LANE)
    t2 = flat_t.reshape(rows_p, LANE)

    kernel = functools.partial(_wbce_kernel, epsilon=float(epsilon),
                               w0=w0, w1=w1, n_elem=n_elem, tr=tr)

    loss = pl.pallas_call(
        kernel,
        out_shape=jax.ShapeDtypeStruct((1, 1), jnp.float32),
        grid_spec=pltpu.PrefetchScalarGridSpec(
            num_scalar_prefetch=0,
            grid=(rows_p // tr,),
            in_specs=[pl.BlockSpec((tr, LANE), lambda i: (i, 0)),
                      pl.BlockSpec((tr, LANE), lambda i: (i, 0))],
            out_specs=pl.BlockSpec((1, 1), lambda i: (0, 0)),
            scratch_shapes=[pltpu.VMEM((tr, LANE), jnp.float32)],
        ),
        compiler_params=pltpu.CompilerParams(
            dimension_semantics=("arbitrary",)),
        # TODO(synk): on v7x, split the grid (parallel, arbitrary) across the
        # 2 TensorCores with per-core partial outputs if EUP-bound.
    )(o2, t2)
    return loss[0, 0]


def _reference(out, target, weights=None, epsilon=0.01):
    o = jnp.clip(out.astype(jnp.float32), epsilon, 1.0 - epsilon)
    t = target.astype(jnp.float32)
    if weights is not None:
        loss = weights[1] * (t * jnp.log(o)) + weights[0] * ((1 - t) * jnp.log(1 - o))
    else:
        loss = t * jnp.log(o) + (1 - t) * jnp.log(1 - o)
    return -jnp.mean(loss)


if __name__ == "__main__":
    key = jax.random.PRNGKey(0)
    k1, k2, k3, k4, k5, k6 = jax.random.split(key, 6)

    # Case 1: NCHW, lane-aligned size, weighted.
    shape = (2, 4, 16, 16)
    out = jax.random.uniform(k1, shape, jnp.float32, minval=0.0, maxval=1.0)
    target = (jax.random.uniform(k2, shape, jnp.float32) > 0.5).astype(jnp.float32)
    weights = (0.3, 0.7)

    loss_w = weighted_bce_loss(out, target, weights=weights)
    jax.block_until_ready(loss_w)
    ref_w = _reference(out, target, weights=weights)
    assert jnp.allclose(loss_w, ref_w, rtol=1e-5, atol=1e-5), (loss_w, ref_w)

    # Case 2: same inputs, unweighted path.
    loss_u = weighted_bce_loss(out, target, weights=None)
    jax.block_until_ready(loss_u)
    ref_u = _reference(out, target, weights=None)
    assert jnp.allclose(loss_u, ref_u, rtol=1e-5, atol=1e-5), (loss_u, ref_u)

    # Case 3: non-lane-aligned size (exercises the in-kernel tail mask).
    shape_odd = (2, 3, 15, 15)
    out_o = jax.random.uniform(k3, shape_odd, jnp.float32, minval=0.0, maxval=1.0)
    tgt_o = (jax.random.uniform(k4, shape_odd, jnp.float32) > 0.5).astype(jnp.float32)
    loss_o = weighted_bce_loss(out_o, tgt_o, weights=weights)
    jax.block_until_ready(loss_o)
    ref_o = _reference(out_o, tgt_o, weights=weights)
    assert jnp.allclose(loss_o, ref_o, rtol=1e-5, atol=1e-5), (loss_o, ref_o)

    # Case 4: bf16 inputs, multi-tile grid (exercises accumulator across tiles).
    shape_big = (2, 8, 128, 128)
    out_b = jax.random.uniform(k5, shape_big, jnp.float32,
                               minval=0.0, maxval=1.0).astype(jnp.bfloat16)
    tgt_b = (jax.random.uniform(k6, shape_big, jnp.float32) > 0.5).astype(jnp.bfloat16)
    loss_b = weighted_bce_loss(out_b, tgt_b, weights=weights)
    jax.block_until_ready(loss_b)
    ref_b = _reference(out_b, tgt_b, weights=weights)
    assert jnp.allclose(loss_b, ref_b, rtol=1e-4, atol=1e-4), (loss_b, ref_b)

    print("KERNEL_OK")
</pallas_src>

<mosaic_0001>
module attributes {stable_mosaic.version = 11 : i64} {
  func.func @_wbce_kernel(%arg0: i32, %arg1: memref<16x128xf32, #tpu.memory_space<vmem>>, %arg2: memref<16x128xf32, #tpu.memory_space<vmem>>, %arg3: memref<1x1xf32, #tpu.memory_space<vmem>>, %arg4: memref<16x128xf32, #tpu.memory_space<vmem>>) attributes {dimension_semantics = [#tpu.dimension_semantics<arbitrary>], iteration_bounds = array<i64: 1>, scalar_prefetch = 0 : i64, scratch_operands = 1 : i64, tpu.core_type = #tpu.core_type<tc>, window_params = [{transform_indices = @transform_0, window_bounds = array<i64: 16, 128>}, {transform_indices = @transform_1, window_bounds = array<i64: 16, 128>}, {pipeline_mode = #tpu.pipeline_mode<synchronous>, transform_indices = @transform_2, window_bounds = array<i64: 1, 1>}]} {
    %c0_i32 = arith.constant 0 : i32
    %0 = arith.cmpi eq, %arg0, %c0_i32 : i32
    %1 = arith.extui %0 : i1 to i32
    %c0_i32_0 = arith.constant 0 : i32
    %2 = arith.cmpi ne, %1, %c0_i32_0 : i32
    scf.if %2 {
      %cst_15 = arith.constant 0.000000e+00 : f32
      %41 = vector.broadcast %cst_15 : f32 to vector<16x128xf32>
      %c0_16 = arith.constant 0 : index
      %c0_17 = arith.constant 0 : index
      %42 = vector.load %arg4[%c0_16, %c0_17] : memref<16x128xf32, #tpu.memory_space<vmem>>, vector<16x128xf32>
      tpu.vector_store %arg4[%c0_16, %c0_17], %41 {strides = array<i32>} : memref<16x128xf32, #tpu.memory_space<vmem>>, vector<16x128xf32>,
    } else {
    }
    %c0 = arith.constant 0 : index
    %c0_1 = arith.constant 0 : index
    %3 = vector.load %arg1[%c0, %c0_1] : memref<16x128xf32, #tpu.memory_space<vmem>>, vector<16x128xf32>
    %cst = arith.constant 0.00999999977 : f32
    %cst_2 = arith.constant 9.900000e-01 : f32
    %4 = vector.broadcast %cst : f32 to vector<16x128xf32>
    %5 = arith.maximumf %4, %3 : vector<16x128xf32>
    %6 = vector.broadcast %cst_2 : f32 to vector<16x128xf32>
    %7 = arith.minimumf %6, %5 : vector<16x128xf32>
    %c0_3 = arith.constant 0 : index
    %c0_4 = arith.constant 0 : index
    %8 = vector.load %arg2[%c0_3, %c0_4] : memref<16x128xf32, #tpu.memory_space<vmem>>, vector<16x128xf32>
    %9 = math.log %7 : vector<16x128xf32>
    %10 = arith.mulf %8, %9 : vector<16x128xf32>
    %cst_5 = arith.constant 0.699999988 : f32
    %11 = vector.broadcast %cst_5 : f32 to vector<16x128xf32>
    %12 = arith.mulf %11, %10 : vector<16x128xf32>
    %cst_6 = arith.constant 1.000000e+00 : f32
    %13 = vector.broadcast %cst_6 : f32 to vector<16x128xf32>
    %14 = arith.subf %13, %8 : vector<16x128xf32>
    %cst_7 = arith.constant 1.000000e+00 : f32
    %15 = vector.broadcast %cst_7 : f32 to vector<16x128xf32>
    %16 = arith.subf %15, %7 : vector<16x128xf32>
    %17 = math.log %16 : vector<16x128xf32>
    %18 = arith.mulf %14, %17 : vector<16x128xf32>
    %cst_8 = arith.constant 3.000000e-01 : f32
    %19 = vector.broadcast %cst_8 : f32 to vector<16x128xf32>
    %20 = arith.mulf %19, %18 : vector<16x128xf32>
    %21 = arith.addf %12, %20 : vector<16x128xf32>
    %22 = tpu.iota {dimensions = array<i32: 0>} : vector<16x128xi32>
    %23 = tpu.iota {dimensions = array<i32: 1>} : vector<16x128xi32>
    %c16_i32 = arith.constant 16 : i32
    %24 = arith.muli %arg0, %c16_i32 : i32
    %25 = vector.broadcast %24 : i32 to vector<16x128xi32>
    %26 = arith.addi %25, %22 : vector<16x128xi32>
    %c128_i32 = arith.constant 128 : i32
    %27 = vector.broadcast %c128_i32 : i32 to vector<16x128xi32>
    %28 = arith.muli %26, %27 : vector<16x128xi32>
    %29 = arith.addi %28, %23 : vector<16x128xi32>
    %c2048_i32 = arith.constant 2048 : i32
    %30 = vector.broadcast %c2048_i32 : i32 to vector<16x128xi32>
    %31 = arith.cmpi slt, %29, %30 : vector<16x128xi32>
    %32 = arith.extui %31 : vector<16x128xi1> to vector<16x128xi32>
    %33 = arith.sitofp %32 : vector<16x128xi32> to vector<16x128xf32>
    %c0_9 = arith.constant 0 : index
    %c0_10 = arith.constant 0 : index
    %34 = vector.load %arg4[%c0_9, %c0_10] : memref<16x128xf32, #tpu.memory_space<vmem>>, vector<16x128xf32>
    %35 = arith.mulf %21, %33 : vector<16x128xf32>
    %36 = arith.addf %34, %35 : vector<16x128xf32>
    %c0_11 = arith.constant 0 : index
    %c0_12 = arith.constant 0 : index
    %37 = vector.load %arg4[%c0_11, %c0_12] : memref<16x128xf32, #tpu.memory_space<vmem>>, vector<16x128xf32>
    tpu.vector_store %arg4[%c0_11, %c0_12], %36 {strides = array<i32>} : memref<16x128xf32, #tpu.memory_space<vmem>>, vector<16x128xf32>,
    %c0_i32_13 = arith.constant 0 : i32
    %38 = arith.cmpi eq, %arg0, %c0_i32_13 : i32
    %39 = arith.extui %38 : i1 to i32
    %c0_i32_14 = arith.constant 0 : i32
    %40 = arith.cmpi ne, %39, %c0_i32_14 : i32
    scf.if %40 {
      %c0_15 = arith.constant 0 : index
      %c0_16 = arith.constant 0 : index
      %41 = vector.load %arg4[%c0_15, %c0_16] : memref<16x128xf32, #tpu.memory_space<vmem>>, vector<16x128xf32>
      %cst_17 = arith.constant dense<0.000000e+00> : vector<128xf32>
      %42 = vector.multi_reduction <add>, %41, %cst_17 [0] : vector<16x128xf32> to vector<128xf32>
      %43 = vector.shape_cast %42 : vector<128xf32> to vector<1x128xf32>
      %cst_18 = arith.constant dense<0.000000e+00> : vector<1xf32>
      %44 = vector.multi_reduction <add>, %43, %cst_18 [1] : vector<1x128xf32> to vector<1xf32>
      %45 = vector.shape_cast %44 : vector<1xf32> to vector<1x1xf32>
      %cst_19 = arith.constant 2.048000e+03 : f32
      %46 = vector.broadcast %cst_19 : f32 to vector<1x1xf32>
      %47 = arith.divf %45, %46 : vector<1x1xf32>
      %cst_20 = arith.constant 0.000000e+00 : f32
      %48 = vector.broadcast %cst_20 : f32 to vector<1x1xf32>
      %49 = arith.subf %48, %47 : vector<1x1xf32>
      %c0_21 = arith.constant 0 : index
      %c0_22 = arith.constant 0 : index
      %50 = vector.load %arg3[%c0_21, %c0_22] : memref<1x1xf32, #tpu.memory_space<vmem>>, vector<1x1xf32>
      tpu.vector_store %arg3[%c0_21, %c0_22], %49 {strides = array<i32>} : memref<1x1xf32, #tpu.memory_space<vmem>>, vector<1x1xf32>,
    } else {
    }
    return
  }
  func.func @transform_0(%arg0: i32) -> (i32, i32) {
    %c0_i32 = arith.constant 0 : i32
    %c0_i32_0 = arith.constant 0 : i32
    return %arg0, %c0_i32 : i32, i32
  }
  func.func @transform_1(%arg0: i32) -> (i32, i32) {
    %c0_i32 = arith.constant 0 : i32
    %c0_i32_0 = arith.constant 0 : i32
    return %arg0, %c0_i32 : i32, i32
  }
  func.func @transform_2(%arg0: i32) -> (i32, i32) {
    %c0_i32 = arith.constant 0 : i32
    %c0_i32_0 = arith.constant 0 : i32
    %c0_i32_1 = arith.constant 0 : i32
    return %c0_i32, %c0_i32_0 : i32, i32
  }
}

</mosaic_0001>

<llo_original>
// kernel: tpu_custom_call.1
$region0: #{tpu_custom_call.1}
  #allocation0 [shape = 'u32[]', space=smem, size = 0x4, offset = 0x4, fixed_abs, tag = 'smem constant byte address 0x4 - core index']
  #allocation1 [shape = 'u32[144,128]{1,0:T(1,128)}', space=vmem, size = 0x12000, scoped, tag = 'internal scratch']
  #allocation2 [shape = 'f32[16,128]{1,0:T(8,128)}', space=vmem, size = 0x2000, scoped, tag = 'scratch operand']
  %s0 = inlined_call_operand.hbm [shape: f32[16,128], index: 0, kind: input, shape index: {}]
  %s1 = inlined_call_operand.hbm [shape: f32[16,128], index: 1, kind: input, shape index: {}]
  %s2 = inlined_call_operand.hbm [shape: f32[1,1], index: 2, kind: output, shape index: {}]
  %s3 = sld [smem:[#allocation0]]
  $region34: #{tpu_custom_call.1} parent=0
    _
  %s5 = ssub.s32 1, %s3
  %s6 = scalar_select 0, %s5, %s3
  $region1: #{tpu_custom_call.1} parent=0
    #allocation3 [shape = 'u8[8192]{0}', space=vmem, size = 0x2000, scoped, tag = 'input window, operand 0, single buffered']
    #allocation4 [shape = 's32[1]{0}', space=sflag, size = 0x4, scoped, tag = 'scoped memory for tpu_custom_call.1']
    #allocation5 [shape = 's32[1]{0}', space=sflag, size = 0x4, scoped, tag = 'scoped memory for tpu_custom_call.1']
    #allocation6 [shape = 'u8[8192]{0}', space=vmem, size = 0x2000, scoped, tag = 'input window, operand 1, single buffered']
    #allocation7 [shape = 's32[1]{0}', space=sflag, size = 0x4, scoped, tag = 'scoped memory for tpu_custom_call.1']
    #allocation8 [shape = 'u8[512]{0}', space=vmem, size = 0x400, scoped, tag = 'output window, operand 0, single buffered']
    %7 = vsyncpa [#allocation4], 0
    %8 = vsyncpa [#allocation7], 0
    %9 = vsyncpa [#allocation5], 0
    // Predicated region
    $region2: #{tpu_custom_call.1} parent=1 // pred_check
      _
    $region3: #{tpu_custom_call.1} parent=1 // pred_check_branch
      %11 = sbr.rel (0) target = $region5
    $region4: #{tpu_custom_call.1} parent=1 // pred_region
      %s13 = ssub.s32 256, 256
      %14 = vsyncadd [#allocation4], %s13
      %s15 = sshll.u32 [#allocation3], 4
      %s16 = int_to_ptr.vmem [resolvable:$true] %s15
      %21 = dma.hbm_to_vmem [thread:$0]  %s0, 256, %s16, [#allocation4], 128, 128, 8
    $region5: #{tpu_custom_call.1} parent=1 // pred_fallthru
      _
    // Predicated region
    $region6: #{tpu_custom_call.1} parent=1 // pred_check
      _
    $region7: #{tpu_custom_call.1} parent=1 // pred_check_branch
      %23 = sbr.rel (0) target = $region9
    $region8: #{tpu_custom_call.1} parent=1 // pred_region
      %s25 = ssub.s32 256, 256
      %26 = vsyncadd [#allocation7], %s25
      %s27 = sshll.u32 [#allocation6], 4
      %s28 = int_to_ptr.vmem [resolvable:$true] %s27
      %33 = dma.hbm_to_vmem [thread:$0]  %s1, 256, %s28, [#allocation7], 128, 128, 8
    $region9: #{tpu_custom_call.1} parent=1 // pred_fallthru
      _
    // Predicated region
    $region10: #{tpu_custom_call.1} parent=1 // pred_check
      _
    $region11: #{tpu_custom_call.1} parent=1 // pred_check_branch
      %35 = sbr.rel (0) target = $region13
    $region12: #{tpu_custom_call.1} parent=1 // pred_region
      %36 = dma.done [#allocation4], 256
    $region13: #{tpu_custom_call.1} parent=1 // pred_fallthru
      _
    // Predicated region
    $region14: #{tpu_custom_call.1} parent=1 // pred_check
      _
    $region15: #{tpu_custom_call.1} parent=1 // pred_check_branch
      %38 = sbr.rel (0) target = $region17
    $region16: #{tpu_custom_call.1} parent=1 // pred_region
      %39 = dma.done [#allocation7], 256
    $region17: #{tpu_custom_call.1} parent=1 // pred_fallthru
      _
    %p40 = scmp.eq.s32.totalorder 0, 0
    // Predicated region
    $region18: #{tpu_custom_call.1} parent=1 // pred_check
      %p41 = pneg %p40
    $region19: #{tpu_custom_call.1} parent=1 // pred_check_branch
      %43 = sbr.rel (%p41) target = $region21
    $region20: #{tpu_custom_call.1} parent=1 // pred_region
      %44 = vst [vmem:[#allocation2] sm:$0xff] 0.0
      %45 = vst [vmem:[#allocation2 + $0x8] sm:$0xff] 0.0
    $region21: #{tpu_custom_call.1} parent=1 // pred_fallthru
      _
    %v46 = vld [vmem:[#allocation3] sm:$0xff]
    %v47 = vld [vmem:[#allocation3 + $0x8] sm:$0xff]
    %v48 = vmax.f32 %v46, 0.01
    %v49 = vmax.f32 %v47, 0.01
    %v50 = vmin.f32 %v48, 0.99
    %v51 = vmin.f32 %v49, 0.99
    %v52 = vld [vmem:[#allocation6] sm:$0xff]
    %v53 = vld [vmem:[#allocation6 + $0x8] sm:$0xff]
    %v54 = vlog2.pop %v50
    %v55 = vmul.f32 %v54, 0.6931472
    %v56 = vlog2.pop %v51
    %v57 = vmul.f32 %v56, 0.6931472
    %v58 = vmul.f32 %v52, %v55
    %v59 = vmul.f32 %v53, %v57
    %v60 = vmul.f32 %v58, 0.7
    %v61 = vmul.f32 %v59, 0.7
    %v62 = vsub.f32 1.0, %v52
    %v63 = vsub.f32 1.0, %v53
    %v64 = vsub.f32 1.0, %v50
    %v65 = vsub.f32 1.0, %v51
    %v66 = vlog2.pop %v64
    %v67 = vmul.f32 %v66, 0.6931472
    %v68 = vlog2.pop %v65
    %v69 = vmul.f32 %v68, 0.6931472
    %v70 = vmul.f32 %v62, %v67
    %v71 = vmul.f32 %v63, %v69
    %v72 = vmul.f32 %v70, 0.3
    %v73 = vmul.f32 %v71, 0.3
    %v74 = vadd.f32 %v60, %v72
    %v75 = vadd.f32 %v61, %v73
    %v76 = vlaneseq
    %v77 = vshrl.u32 %v76, 7
    %v78 = vadd.s32 %v77, 8
    %v79 = vlaneseq
    %v80 = vand.u32 %v79, 127
    %s81 = smul.u32 0, 16
    %v82 = vstv %s81
    %v83 = vadd.s32 %v82, %v77
    %v84 = vadd.s32 %v82, %v78
    %v85 = vmul.u32 %v83, 128
    %v86 = vmul.u32 %v84, 128
    %v87 = vadd.s32 %v85, %v80
    %v88 = vadd.s32 %v86, %v80
    %vm89 = vcmp.lt.s32.totalorder %v87, 2048
    %vm90 = vcmp.lt.s32.totalorder %v88, 2048
    %v91 = vsel %vm89, 1, 0
    %v92 = vsel %vm90, 1, 0
    %v93 = vcvt.s32.f32 %v91
    %v94 = vcvt.s32.f32 %v92
    %v95 = vld [vmem:[#allocation2] sm:$0xff]
    %v96 = vld [vmem:[#allocation2 + $0x8] sm:$0xff]
    %v97 = vmul.f32 %v74, %v93
    %v98 = vmul.f32 %v75, %v94
    %v99 = vadd.f32 %v95, %v97
    %v100 = vadd.f32 %v96, %v98
    %101 = vst [vmem:[#allocation2] sm:$0xff] %v99
    %102 = vst [vmem:[#allocation2 + $0x8] sm:$0xff] %v100
    // Predicated region
    $region22: #{tpu_custom_call.1} parent=1 // pred_check
      %p103 = pneg %p40
    $region23: #{tpu_custom_call.1} parent=1 // pred_check_branch
      %105 = sbr.rel (%p103) target = $region25
    $region24: #{tpu_custom_call.1} parent=1 // pred_region
      %v106 = vld [vmem:[#allocation2] sm:$0xff]
      %v107 = vld [vmem:[#allocation2 + $0x8] sm:$0xff]
      %v108 = vadd.f32 %v106, %v107
      %v109 = vrot.slane %v108, 4
      %v110 = vadd.f32 %v108, %v109
      %v111 = vrot.slane %v110, 2
      %v112 = vadd.f32 %v110, %v111
      %v113 = vrot.slane %v112, 1
      %v114 = vadd.f32 %v112, %v113
      %115 = vadd.xlane.f32.xlu0 %v114
      %v116 = vpop.xlane.xlu0 %115
      %v117 = vrcp.pop 2048.0
      %v118 = vmul.f32 %v116, %v117
      %v119 = vsub.f32 0.0, %v118
      %vm120 = vcmask 0
      %121 = vst.msk [vmem:[#allocation8] sm:$0x1] %vm120, %v119
    $region25: #{tpu_custom_call.1} parent=1 // pred_fallthru
      _
    // Predicated region
    $region26: #{tpu_custom_call.1} parent=1 // pred_check
      _
    $region27: #{tpu_custom_call.1} parent=1 // pred_check_branch
      %123 = sbr.rel (0) target = $region29
    $region28: #{tpu_custom_call.1} parent=1 // pred_region
      %s125 = ssub.s32 16, 16
      %126 = vsyncadd [#allocation5], %s125
      %s128 = sshll.u32 [#allocation8], 4
      %s129 = int_to_ptr.vmem [resolvable:$true] %s128
      %131 = dma.vmem_to_hbm [thread:$0]  %s129, 16, %s2, [#allocation5]
    $region29: #{tpu_custom_call.1} parent=1 // pred_fallthru
      _
    // Predicated region
    $region30: #{tpu_custom_call.1} parent=1 // pred_check
      _
    $region31: #{tpu_custom_call.1} parent=1 // pred_check_branch
      %133 = sbr.rel (0) target = $region33
    $region32: #{tpu_custom_call.1} parent=1 // pred_region
      %134 = dma.done [#allocation5], 16
    $region33: #{tpu_custom_call.1} parent=1 // pred_fallthru
      _
    %135 = vsyncpa [#allocation4], 1
    %136 = vsyncpa [#allocation7], 1
    %137 = vsyncpa [#allocation5], 1

</llo_original>
